<compile_context>
chip_gen: v7x
topology: tpu7x:2x2x1
jax: 0.10.0
libtpu: 0.0.40
codegen_flags: <defaults>
</compile_context>

<pallas_src>
import jax
import jax.numpy as jnp
from jax.experimental import pallas as pl
from jax.experimental.pallas import tpu as pltpu

RES_SCALE = 0.1


def resblock_kernel(x_ref, a1_ref, b1_ref, a2_ref, b2_ref, out_ref, pad_ref):
    # x_ref  : (1, H, W*C)  f32  lane-dense input (one batch element)
    # a1_ref : (3*W*C, W*F) bf16 banded conv1 weights
    # b1_ref : (1, W*F)     f32  conv1 bias tiled along W
    # a2_ref : (3*W*F, W*C) bf16 banded conv2 weights
    # b2_ref : (1, W*C)     f32  conv2 bias tiled along W
    # out_ref: (1, H, W*C)  f32
    # pad_ref: (H+2, W*C)   f32  VMEM scratch: activation with a 1-row halo
    H = x_ref.shape[1]
    x2d = x_ref[0]  # (H, W*C)

    # Zero only the two halo rows (cheap; redone every grid step -> megacore-safe).
    zero_row = jnp.zeros((1, pad_ref.shape[1]), jnp.float32)
    pad_ref[0:1, :] = zero_row
    pad_ref[H + 1:H + 2, :] = zero_row

    def conv3x3(act, w_ref, b_ref):
        # Row halo via the scratch: rows [0:H] give act[h-1], [2:H+2] give act[h+1].
        pad_ref[1:H + 1, :] = act
        up = pad_ref[0:H, :]
        dn = pad_ref[2:H + 2, :]
        # Lane-aligned concat (each piece is a multiple of 128 lanes); the width halo
        # is folded into the banded weight matrix, so this is one MXU push per conv.
        cat = jnp.concatenate([up, act, dn], axis=1).astype(jnp.bfloat16)
        acc = jnp.dot(cat, w_ref[...], preferred_element_type=jnp.float32)
        return acc + b_ref[...]

    y1 = jnp.maximum(conv3x3(x2d, a1_ref, b1_ref), 0.0)  # (H, W*F)
    y2 = conv3x3(y1, a2_ref, b2_ref)                      # (H, W*C)

    # Residual: out = x + res_scale * body(x), stored lane-dense (unmasked vst).
    out_ref[0] = (x2d + RES_SCALE * y2).astype(out_ref.dtype)


def _banded_conv_matrix(w_hwio, W):
    """Fold a 3x3 'SAME' conv over the width axis into one dense matrix.

    w_hwio: (3, 3, Cin, Cout)  ->  A: (3*W*Cin, W*Cout), such that for a lane-dense
    activation row x[h] (shape (W*Cin,)):  y[h] = concat([x[h-1], x[h], x[h+1]]) @ A
    reproduces the zero-padded conv (the width halo is encoded in A's band).
    """
    _, _, cin, cout = w_hwio.shape
    wp = jnp.arange(W)[:, None]          # input column  w'
    wc = jnp.arange(W)[None, :]          # output column w
    kw = wp - wc + 1                     # width tap index, valid in [0, 2]
    valid = (kw >= 0) & (kw <= 2)
    kw_c = jnp.clip(kw, 0, 2)
    # blocks[kh, wp, wc, ci, co] = w[kh, wp-wc+1, ci, co] * [|wp-wc| <= 1]
    blocks = w_hwio[:, kw_c] * valid[None, :, :, None, None].astype(w_hwio.dtype)
    # rows ordered (kh, wp, ci); cols ordered (wc, co)
    return jnp.transpose(blocks, (0, 1, 3, 2, 4)).reshape(3 * W * cin, W * cout)


def resblock_pallas(x_nchw, w1, b1, w2, b2):
    """x_nchw: (N, C, H, W) f32; conv weights in HWIO. Returns (N, C, H, W) f32."""
    N, C, H, W = x_nchw.shape
    F = w1.shape[3]
    assert F == C, "residual add requires num_features == in_channels"
    WC, WF = W * C, W * F

    # NCHW -> NHWC -> lane-dense (N, H, W*C). No spatial padding materialized in HBM.
    x_flat = jnp.transpose(x_nchw, (0, 2, 3, 1)).reshape(N, H, WC)

    a1 = _banded_conv_matrix(w1, W).astype(jnp.bfloat16)         # (3*WC, WF)
    a2 = _banded_conv_matrix(w2, W).astype(jnp.bfloat16)         # (3*WF, WC)
    b1_row = jnp.tile(b1, W).reshape(1, WF).astype(jnp.float32)
    b2_row = jnp.tile(b2, W).reshape(1, WC).astype(jnp.float32)

    out_flat = pl.pallas_call(
        resblock_kernel,
        out_shape=jax.ShapeDtypeStruct((N, H, WC), jnp.float32),
        grid_spec=pltpu.PrefetchScalarGridSpec(
            num_scalar_prefetch=0,
            grid=(N,),
            in_specs=[
                pl.BlockSpec((1, H, WC), lambda n: (n, 0, 0)),
                pl.BlockSpec((3 * WC, WF), lambda n: (0, 0)),   # resident weights
                pl.BlockSpec((1, WF), lambda n: (0, 0)),
                pl.BlockSpec((3 * WF, WC), lambda n: (0, 0)),
                pl.BlockSpec((1, WC), lambda n: (0, 0)),
            ],
            out_specs=pl.BlockSpec((1, H, WC), lambda n: (n, 0, 0)),
            scratch_shapes=[pltpu.VMEM((H + 2, WC), jnp.float32)],
        ),
        compiler_params=pltpu.CompilerParams(
            dimension_semantics=("parallel",)),
    )(x_flat, a1, b1_row, a2, b2_row)

    out_nhwc = out_flat.reshape(N, H, W, C)
    return jnp.transpose(out_nhwc, (0, 3, 1, 2))  # back to NCHW


def resblock_ref(x_nchw, w1, b1, w2, b2):
    """Pure-JAX f32 reference (mirrors the PyTorch forward)."""
    x = jnp.transpose(x_nchw, (0, 2, 3, 1))
    dn = ("NHWC", "HWIO", "NHWC")
    y = jax.lax.conv_general_dilated(x, w1, (1, 1), "SAME",
                                     dimension_numbers=dn) + b1
    y = jnp.maximum(y, 0.0)
    y = jax.lax.conv_general_dilated(y, w2, (1, 1), "SAME",
                                     dimension_numbers=dn) + b2
    out = x + RES_SCALE * y
    return jnp.transpose(out, (0, 3, 1, 2))


if __name__ == "__main__":
    # N=2, in_channels=num_features=8, 16x16 spatial -> W*C = 128 (lane-dense).
    N, C, H, W = 2, 8, 16, 16
    F = C  # num_features == in_channels (required by the residual add)

    key = jax.random.PRNGKey(0)
    kx, k1, kb1, k2, kb2 = jax.random.split(key, 5)
    x = jax.random.normal(kx, (N, C, H, W), jnp.float32)
    # Conv params in HWIO layout (equivalent to nn.Conv2d(C, F, 3, bias=True)).
    w1 = jax.random.normal(k1, (3, 3, C, F), jnp.float32) * 0.1
    b1 = jax.random.normal(kb1, (F,), jnp.float32) * 0.1
    w2 = jax.random.normal(k2, (3, 3, F, C), jnp.float32) * 0.1
    b2 = jax.random.normal(kb2, (C,), jnp.float32) * 0.1

    out = resblock_pallas(x, w1, b1, w2, b2)
    out = jax.block_until_ready(out)

    ref = resblock_ref(x, w1, b1, w2, b2)
    assert out.shape == (N, C, H, W)
    # bf16 MXU operands (f32 accumulation) -> looser tolerance than the pure-f32 path.
    assert jnp.allclose(out, ref, atol=2e-2, rtol=2e-2), "mismatch vs reference"

    print("KERNEL_OK")
</pallas_src>

<mosaic_0001>
module attributes {stable_mosaic.version = 11 : i64} {
  func.func @resblock_kernel(%arg0: i32, %arg1: memref<1x16x128xf32, #tpu.memory_space<vmem>>, %arg2: memref<384x128xbf16, #tpu.memory_space<vmem>>, %arg3: memref<1x128xf32, #tpu.memory_space<vmem>>, %arg4: memref<384x128xbf16, #tpu.memory_space<vmem>>, %arg5: memref<1x128xf32, #tpu.memory_space<vmem>>, %arg6: memref<1x16x128xf32, #tpu.memory_space<vmem>>, %arg7: memref<18x128xf32, #tpu.memory_space<vmem>>) attributes {dimension_semantics = [#tpu.dimension_semantics<parallel>], iteration_bounds = array<i64: 2>, scalar_prefetch = 0 : i64, scratch_operands = 1 : i64, tpu.core_type = #tpu.core_type<tc>, window_params = [{transform_indices = @transform_0, window_bounds = array<i64: 1, 16, 128>}, {pipeline_mode = #tpu.pipeline_mode<synchronous>, transform_indices = @transform_1, window_bounds = array<i64: 384, 128>}, {pipeline_mode = #tpu.pipeline_mode<synchronous>, transform_indices = @transform_2, window_bounds = array<i64: 1, 128>}, {pipeline_mode = #tpu.pipeline_mode<synchronous>, transform_indices = @transform_3, window_bounds = array<i64: 384, 128>}, {pipeline_mode = #tpu.pipeline_mode<synchronous>, transform_indices = @transform_4, window_bounds = array<i64: 1, 128>}, {transform_indices = @transform_5, window_bounds = array<i64: 1, 16, 128>}]} {
    %c0 = arith.constant 0 : index
    %c0_0 = arith.constant 0 : index
    %c0_1 = arith.constant 0 : index
    %0 = vector.load %arg1[%c0, %c0_0, %c0_1] : memref<1x16x128xf32, #tpu.memory_space<vmem>>, vector<1x16x128xf32>
    %1 = vector.shape_cast %0 : vector<1x16x128xf32> to vector<16x128xf32>
    %cst = arith.constant 0.000000e+00 : f32
    %2 = vector.broadcast %cst : f32 to vector<1x128xf32>
    %c0_2 = arith.constant 0 : index
    %c0_3 = arith.constant 0 : index
    %3 = vector.load %arg7[%c0_2, %c0_3] : memref<18x128xf32, #tpu.memory_space<vmem>>, vector<1x128xf32>
    tpu.vector_store %arg7[%c0_2, %c0_3], %2 {strides = array<i32>} : memref<18x128xf32, #tpu.memory_space<vmem>>, vector<1x128xf32>,
    %c17 = arith.constant 17 : index
    %c0_4 = arith.constant 0 : index
    %4 = vector.load %arg7[%c17, %c0_4] : memref<18x128xf32, #tpu.memory_space<vmem>>, vector<1x128xf32>
    tpu.vector_store %arg7[%c17, %c0_4], %2 {strides = array<i32>} : memref<18x128xf32, #tpu.memory_space<vmem>>, vector<1x128xf32>,
    %c1 = arith.constant 1 : index
    %c0_5 = arith.constant 0 : index
    %5 = vector.load %arg7[%c1, %c0_5] : memref<18x128xf32, #tpu.memory_space<vmem>>, vector<16x128xf32>
    tpu.vector_store %arg7[%c1, %c0_5], %1 {strides = array<i32>} : memref<18x128xf32, #tpu.memory_space<vmem>>, vector<16x128xf32>,
    %c0_6 = arith.constant 0 : index
    %c0_7 = arith.constant 0 : index
    %6 = vector.load %arg7[%c0_6, %c0_7] : memref<18x128xf32, #tpu.memory_space<vmem>>, vector<16x128xf32>
    %c2 = arith.constant 2 : index
    %c0_8 = arith.constant 0 : index
    %7 = vector.load %arg7[%c2, %c0_8] : memref<18x128xf32, #tpu.memory_space<vmem>>, vector<16x128xf32>
    %8 = tpu.concatenate %6, %1, %7 in 1 : vector<16x128xf32>, vector<16x128xf32>, vector<16x128xf32> -> vector<16x384xf32>
    %9 = arith.truncf %8 : vector<16x384xf32> to vector<16x384xbf16>
    %c0_9 = arith.constant 0 : index
    %c0_10 = arith.constant 0 : index
    %10 = vector.load %arg2[%c0_9, %c0_10] : memref<384x128xbf16, #tpu.memory_space<vmem>>, vector<384x128xbf16>
    %cst_11 = arith.constant dense<0.000000e+00> : vector<16x128xf32>
    %11 = tpu.matmul %9, %10, %cst_11 {dimension_numbers = #tpu.dot_dimension_numbers<[1], [0], [0], [1], [0, 0, 1, 1], [], []>} : vector<16x384xbf16>, vector<384x128xbf16>, vector<16x128xf32> -> vector<16x128xf32>
    %c0_12 = arith.constant 0 : index
    %c0_13 = arith.constant 0 : index
    %12 = vector.load %arg3[%c0_12, %c0_13] : memref<1x128xf32, #tpu.memory_space<vmem>>, vector<1x128xf32>
    %13 = vector.broadcast %12 : vector<1x128xf32> to vector<16x128xf32>
    %14 = arith.addf %11, %13 : vector<16x128xf32>
    %cst_14 = arith.constant 0.000000e+00 : f32
    %15 = vector.broadcast %cst_14 : f32 to vector<16x128xf32>
    %16 = arith.maximumf %14, %15 : vector<16x128xf32>
    %c1_15 = arith.constant 1 : index
    %c0_16 = arith.constant 0 : index
    %17 = vector.load %arg7[%c1_15, %c0_16] : memref<18x128xf32, #tpu.memory_space<vmem>>, vector<16x128xf32>
    tpu.vector_store %arg7[%c1_15, %c0_16], %16 {strides = array<i32>} : memref<18x128xf32, #tpu.memory_space<vmem>>, vector<16x128xf32>,
    %c0_17 = arith.constant 0 : index
    %c0_18 = arith.constant 0 : index
    %18 = vector.load %arg7[%c0_17, %c0_18] : memref<18x128xf32, #tpu.memory_space<vmem>>, vector<16x128xf32>
    %c2_19 = arith.constant 2 : index
    %c0_20 = arith.constant 0 : index
    %19 = vector.load %arg7[%c2_19, %c0_20] : memref<18x128xf32, #tpu.memory_space<vmem>>, vector<16x128xf32>
    %20 = tpu.concatenate %18, %16, %19 in 1 : vector<16x128xf32>, vector<16x128xf32>, vector<16x128xf32> -> vector<16x384xf32>
    %21 = arith.truncf %20 : vector<16x384xf32> to vector<16x384xbf16>
    %c0_21 = arith.constant 0 : index
    %c0_22 = arith.constant 0 : index
    %22 = vector.load %arg4[%c0_21, %c0_22] : memref<384x128xbf16, #tpu.memory_space<vmem>>, vector<384x128xbf16>
    %cst_23 = arith.constant dense<0.000000e+00> : vector<16x128xf32>
    %23 = tpu.matmul %21, %22, %cst_23 {dimension_numbers = #tpu.dot_dimension_numbers<[1], [0], [0], [1], [0, 0, 1, 1], [], []>} : vector<16x384xbf16>, vector<384x128xbf16>, vector<16x128xf32> -> vector<16x128xf32>
    %c0_24 = arith.constant 0 : index
    %c0_25 = arith.constant 0 : index
    %24 = vector.load %arg5[%c0_24, %c0_25] : memref<1x128xf32, #tpu.memory_space<vmem>>, vector<1x128xf32>
    %25 = vector.broadcast %24 : vector<1x128xf32> to vector<16x128xf32>
    %26 = arith.addf %23, %25 : vector<16x128xf32>
    %cst_26 = arith.constant 1.000000e-01 : f32
    %27 = vector.broadcast %cst_26 : f32 to vector<16x128xf32>
    %28 = arith.mulf %27, %26 : vector<16x128xf32>
    %29 = arith.addf %1, %28 : vector<16x128xf32>
    %c0_27 = arith.constant 0 : index
    %c0_28 = arith.constant 0 : index
    %c0_29 = arith.constant 0 : index
    %30 = vector.load %arg6[%c0_27, %c0_28, %c0_29] : memref<1x16x128xf32, #tpu.memory_space<vmem>>, vector<1x16x128xf32>
    %31 = vector.shape_cast %30 : vector<1x16x128xf32> to vector<16x128xf32>
    %32 = vector.shape_cast %29 : vector<16x128xf32> to vector<1x16x128xf32>
    tpu.vector_store %arg6[%c0_27, %c0_28, %c0_29], %32 {strides = array<i32>} : memref<1x16x128xf32, #tpu.memory_space<vmem>>, vector<1x16x128xf32>,
    return
  }
  func.func @transform_0(%arg0: i32) -> (i32, i32, i32) {
    %c0_i32 = arith.constant 0 : i32
    %c0_i32_0 = arith.constant 0 : i32
    %c0_i32_1 = arith.constant 0 : i32
    return %arg0, %c0_i32, %c0_i32_0 : i32, i32, i32
  }
  func.func @transform_1(%arg0: i32) -> (i32, i32) {
    %c0_i32 = arith.constant 0 : i32
    %c0_i32_0 = arith.constant 0 : i32
    %c0_i32_1 = arith.constant 0 : i32
    return %c0_i32, %c0_i32_0 : i32, i32
  }
  func.func @transform_2(%arg0: i32) -> (i32, i32) {
    %c0_i32 = arith.constant 0 : i32
    %c0_i32_0 = arith.constant 0 : i32
    %c0_i32_1 = arith.constant 0 : i32
    return %c0_i32, %c0_i32_0 : i32, i32
  }
  func.func @transform_3(%arg0: i32) -> (i32, i32) {
    %c0_i32 = arith.constant 0 : i32
    %c0_i32_0 = arith.constant 0 : i32
    %c0_i32_1 = arith.constant 0 : i32
    return %c0_i32, %c0_i32_0 : i32, i32
  }
  func.func @transform_4(%arg0: i32) -> (i32, i32) {
    %c0_i32 = arith.constant 0 : i32
    %c0_i32_0 = arith.constant 0 : i32
    %c0_i32_1 = arith.constant 0 : i32
    return %c0_i32, %c0_i32_0 : i32, i32
  }
  func.func @transform_5(%arg0: i32) -> (i32, i32, i32) {
    %c0_i32 = arith.constant 0 : i32
    %c0_i32_0 = arith.constant 0 : i32
    %c0_i32_1 = arith.constant 0 : i32
    return %arg0, %c0_i32, %c0_i32_0 : i32, i32, i32
  }
}

</mosaic_0001>

<llo_original>
// kernel: tpu_custom_call.1
$region0: #{tpu_custom_call.1}
  #allocation0 [shape = 'u32[]', space=smem, size = 0x4, offset = 0x4, fixed_abs, tag = 'smem constant byte address 0x4 - core index']
  #allocation1 [shape = 'u32[144,128]{1,0:T(1,128)}', space=vmem, size = 0x12000, scoped, tag = 'internal scratch']
  #allocation2 [shape = 'f32[18,128]{1,0:T(8,128)}', space=vmem, size = 0x3000, scoped, tag = 'scratch operand']
  %s0 = inlined_call_operand.hbm [shape: f32[2,16,128], index: 0, kind: input, shape index: {}]
  %s1 = inlined_call_operand.hbm [shape: bf16[384,128], index: 1, kind: input, shape index: {}]
  %s2 = inlined_call_operand.vmem [shape: f32[1,128], index: 2, kind: input, shape index: {}]
  %s3 = inlined_call_operand.hbm [shape: bf16[384,128], index: 3, kind: input, shape index: {}]
  %s4 = inlined_call_operand.vmem [shape: f32[1,128], index: 4, kind: input, shape index: {}]
  %s5 = inlined_call_operand.hbm [shape: f32[2,16,128], index: 5, kind: output, shape index: {}]
  %s6 = sld [smem:[#allocation0]]
  $region65: #{tpu_custom_call.1} parent=0
    _
  %s8 = ssub.s32 1, %s6
  %s9 = scalar_select 0, %s8, %s6
  $region1: #{tpu_custom_call.1} parent=0
    #allocation3 [shape = 'u8[16384]{0}', space=vmem, size = 0x4000, scoped, tag = 'input window, operand 0']
    #allocation4 [shape = 's32[2]{0}', space=sflag, size = 0x8, scoped, tag = 'scoped memory for tpu_custom_call.1']
    #allocation5 [shape = 's32[2]{0}', space=sflag, size = 0x8, scoped, tag = 'scoped memory for tpu_custom_call.1']
    #allocation6 [shape = 'u8[98304]{0}', space=vmem, size = 0x18000, scoped, tag = 'input window, operand 1, single buffered']
    #allocation7 [shape = 's32[1]{0}', space=sflag, size = 0x4, scoped, tag = 'scoped memory for tpu_custom_call.1']
    #allocation8 [shape = 'u8[98304]{0}', space=vmem, size = 0x18000, scoped, tag = 'input window, operand 3, single buffered']
    #allocation9 [shape = 'u8[16384]{0}', space=vmem, size = 0x4000, scoped, tag = 'output window, operand 0']
    %10 = vsyncpa [#allocation4], 0
    %s11 = scalar_lea.sflag [#allocation4], 1
    %12 = vsyncpa %s11, 0
    %13 = vsyncpa [#allocation7], 0
    %14 = vsyncpa [#allocation5], 0
    %s15 = scalar_lea.sflag [#allocation5], 1
    %16 = vsyncpa %s15, 0
    loop: start=0, step=1, limit=4
    $region2: #{tpu_custom_call.1} parent=1 // loop_pre_header
      _
    $region3: #{tpu_custom_call.1} parent=1 // loop_header
      %s18 = sphi 0, %s22
      %p19 = scmp.ge.s32.totalorder %s18, 4
      %s28 = sphi 0, %s30
      %s31 = sphi 0, %s28
      %s32 = sphi 0, %s31
      %s48 = sphi 0, %s32
      %s52 = sphi 0, %s52
      %s54 = sphi 0, %s52
      %s55 = sphi 0, %s54
      %s69 = sphi 0, %s55
      %s73 = sphi 0, %s73
      %s75 = sphi 0, %s73
      %s76 = sphi 0, %s75
      %s90 = sphi 0, %s76
      %s94 = sphi 0, %s94
      %s96 = sphi 0, %s94
      %s97 = sphi 0, %s96
      %s111 = sphi 0, %s97
      %s115 = sphi 0, %s115
      %s117 = sphi 0, %s115
      %s118 = sphi 0, %s117
      %s132 = sphi 0, %s118
      %s138 = sphi 0, %s140
      %s141 = sphi 0, %s138
      %s142 = sphi 0, %s141
      %s158 = sphi 0, %s142
    $region4: #{tpu_custom_call.1} parent=1 // loop_header_branch
      %21 = sbr.rel (%p19) target = $region8
    $region5: #{tpu_custom_call.1} parent=1 // loop_body
      %s23 = ssub.s32 %s18, 1
      %s24 = ssub.s32 %s18, 2
      %s25 = sadd.s32 %s18, 1
      %s26 = ssub.s32 %s18, %s25
      %p27 = scmp.eq.s32.totalorder %s26, 0
      %s29 = sadd.s32 %s28, 1
      %s30 = scalar_select %p27, %s28, %s29
      %p33 = pneg %p27
      %p34 = scmp.eq.s32.totalorder %s18, 1
      %p35 = por %p33, %p34
      %p36 = scmp.ne.s32.totalorder %s28, %s31
      %p37 = scmp.eq.s32.totalorder %s18, 0
      %p38 = por %p36, %p37
      %p39 = scmp.ne.s32.totalorder %s28, %s31
      %p40 = scmp.eq.s32.totalorder %s23, 1
      %p41 = por %p39, %p40
      %p42 = scmp.ne.s32.totalorder %s31, %s32
      %p43 = scmp.eq.s32.totalorder %s23, 0
      %p44 = por %p42, %p43
      %p45 = scmp.ne.s32.totalorder %s31, %s32
      %p46 = scmp.eq.s32.totalorder %s24, 1
      %p47 = por %p45, %p46
      %p49 = scmp.ne.s32.totalorder %s32, %s48
      %p50 = scmp.eq.s32.totalorder %s24, 0
      %p51 = por %p49, %p50
      %s53 = sadd.s32 %s52, 1
      %p56 = scmp.eq.s32.totalorder %s18, 1
      %p57 = scmp.ne.s32.totalorder %s52, %s54
      %p58 = scmp.eq.s32.totalorder %s18, 0
      %p59 = por %p57, %p58
      %p60 = scmp.ne.s32.totalorder %s52, %s54
      %p61 = scmp.eq.s32.totalorder %s23, 1
      %p62 = por %p60, %p61
      %p63 = scmp.ne.s32.totalorder %s54, %s55
      %p64 = scmp.eq.s32.totalorder %s23, 0
      %p65 = por %p63, %p64
      %p66 = scmp.ne.s32.totalorder %s54, %s55
      %p67 = scmp.eq.s32.totalorder %s24, 1
      %p68 = por %p66, %p67
      %p70 = scmp.ne.s32.totalorder %s55, %s69
      %p71 = scmp.eq.s32.totalorder %s24, 0
      %p72 = por %p70, %p71
      %s74 = sadd.s32 %s73, 1
      %p77 = scmp.eq.s32.totalorder %s18, 1
      %p78 = scmp.ne.s32.totalorder %s73, %s75
      %p79 = scmp.eq.s32.totalorder %s18, 0
      %p80 = por %p78, %p79
      %p81 = scmp.ne.s32.totalorder %s73, %s75
      %p82 = scmp.eq.s32.totalorder %s23, 1
      %p83 = por %p81, %p82
      %p84 = scmp.ne.s32.totalorder %s75, %s76
      %p85 = scmp.eq.s32.totalorder %s23, 0
      %p86 = por %p84, %p85
      %p87 = scmp.ne.s32.totalorder %s75, %s76
      %p88 = scmp.eq.s32.totalorder %s24, 1
      %p89 = por %p87, %p88
      %p91 = scmp.ne.s32.totalorder %s76, %s90
      %p92 = scmp.eq.s32.totalorder %s24, 0
      %p93 = por %p91, %p92
      %s95 = sadd.s32 %s94, 1
      %p98 = scmp.eq.s32.totalorder %s18, 1
      %p99 = scmp.ne.s32.totalorder %s94, %s96
      %p100 = scmp.eq.s32.totalorder %s18, 0
      %p101 = por %p99, %p100
      %p102 = scmp.ne.s32.totalorder %s94, %s96
      %p103 = scmp.eq.s32.totalorder %s23, 1
      %p104 = por %p102, %p103
      %p105 = scmp.ne.s32.totalorder %s96, %s97
      %p106 = scmp.eq.s32.totalorder %s23, 0
      %p107 = por %p105, %p106
      %p108 = scmp.ne.s32.totalorder %s96, %s97
      %p109 = scmp.eq.s32.totalorder %s24, 1
      %p110 = por %p108, %p109
      %p112 = scmp.ne.s32.totalorder %s97, %s111
      %p113 = scmp.eq.s32.totalorder %s24, 0
      %p114 = por %p112, %p113
      %s116 = sadd.s32 %s115, 1
      %p119 = scmp.eq.s32.totalorder %s18, 1
      %p120 = scmp.ne.s32.totalorder %s115, %s117
      %p121 = scmp.eq.s32.totalorder %s18, 0
      %p122 = por %p120, %p121
      %p123 = scmp.ne.s32.totalorder %s115, %s117
      %p124 = scmp.eq.s32.totalorder %s23, 1
      %p125 = por %p123, %p124
      %p126 = scmp.ne.s32.totalorder %s117, %s118
      %p127 = scmp.eq.s32.totalorder %s23, 0
      %p128 = por %p126, %p127
      %p129 = scmp.ne.s32.totalorder %s117, %s118
      %p130 = scmp.eq.s32.totalorder %s24, 1
      %p131 = por %p129, %p130
      %p133 = scmp.ne.s32.totalorder %s118, %s132
      %p134 = scmp.eq.s32.totalorder %s24, 0
      %p135 = por %p133, %p134
      %s136 = ssub.s32 %s18, %s25
      %p137 = scmp.eq.s32.totalorder %s136, 0
      %s139 = sadd.s32 %s138, 1
      %s140 = scalar_select %p137, %s138, %s139
      %p143 = pneg %p137
      %p144 = scmp.eq.s32.totalorder %s18, 1
      %p145 = por %p143, %p144
      %p146 = scmp.ne.s32.totalorder %s138, %s141
      %p147 = scmp.eq.s32.totalorder %s18, 0
      %p148 = por %p146, %p147
      %p149 = scmp.ne.s32.totalorder %s138, %s141
      %p150 = scmp.eq.s32.totalorder %s23, 1
      %p151 = por %p149, %p150
      %p152 = scmp.ne.s32.totalorder %s141, %s142
      %p153 = scmp.eq.s32.totalorder %s23, 0
      %p154 = por %p152, %p153
      %p155 = scmp.ne.s32.totalorder %s141, %s142
      %p156 = scmp.eq.s32.totalorder %s24, 1
      %p157 = por %p155, %p156
      %p159 = scmp.ne.s32.totalorder %s142, %s158
      %p160 = scmp.eq.s32.totalorder %s24, 0
      %p161 = por %p159, %p160
      %p162 = scmp.le.s32.totalorder 1, %s18
      %p163 = scmp.lt.s32.totalorder %s18, 3
      %p164 = pnand %p162, %p163
      %p165 = pneg %p164
      // Predicated region
      $region9: #{tpu_custom_call.1} parent=5 // pred_check
        _
      $region10: #{tpu_custom_call.1} parent=5 // pred_check_branch
        %167 = sbr.rel (%p164) target = $region12
      $region11: #{tpu_custom_call.1} parent=5 // pred_region
        %s168 = ssub.s32 %s18, 1
        // Predicated region
        $region13: #{tpu_custom_call.1} parent=11 // pred_check
          %p169 = pneg %p65
        $region14: #{tpu_custom_call.1} parent=11 // pred_check_branch
          %171 = sbr.rel (%p169) target = $region16
        $region15: #{tpu_custom_call.1} parent=11 // pred_region
          %s173 = ssub.s32 3072, 3072
          %174 = vsyncadd [#allocation7], %s173
          %s175 = sshll.u32 [#allocation6], 4
          %s176 = int_to_ptr.vmem [resolvable:$true] %s175
          %181 = dma.hbm_to_vmem [thread:$0]  %s1, 3072, %s176, [#allocation7], 64, 64, 4
        $region16: #{tpu_custom_call.1} parent=11 // pred_fallthru
          _
        // Predicated region
        $region17: #{tpu_custom_call.1} parent=11 // pred_check
          %p182 = pneg %p86
        $region18: #{tpu_custom_call.1} parent=11 // pred_check_branch
          %184 = sbr.rel (%p182) target = $region20
        $region19: #{tpu_custom_call.1} parent=11 // pred_region
          _
        $region20: #{tpu_custom_call.1} parent=11 // pred_fallthru
          _
        // Predicated region
        $region21: #{tpu_custom_call.1} parent=11 // pred_check
          %p185 = pneg %p107
        $region22: #{tpu_custom_call.1} parent=11 // pred_check_branch
          %187 = sbr.rel (%p185) target = $region24
        $region23: #{tpu_custom_call.1} parent=11 // pred_region
          %s189 = ssub.s32 3072, 3072
          %190 = vsyncadd [#allocation7], %s189
          %s191 = sshll.u32 [#allocation8], 4
          %s192 = int_to_ptr.vmem [resolvable:$true] %s191
          %197 = dma.hbm_to_vmem [thread:$0]  %s3, 3072, %s192, [#allocation7], 64, 64, 4
        $region24: #{tpu_custom_call.1} parent=11 // pred_fallthru
          _
        // Predicated region
        $region25: #{tpu_custom_call.1} parent=11 // pred_check
          %p198 = pneg %p128
        $region26: #{tpu_custom_call.1} parent=11 // pred_check_branch
          %200 = sbr.rel (%p198) target = $region28
        $region27: #{tpu_custom_call.1} parent=11 // pred_region
          _
        $region28: #{tpu_custom_call.1} parent=11 // pred_fallthru
          _
      $region12: #{tpu_custom_call.1} parent=5 // pred_fallthru
        _
      %p201 = scmp.lt.s32.totalorder %s18, 2
      // Predicated region
      $region29: #{tpu_custom_call.1} parent=5 // pred_check
        %p202 = pneg %p201
      $region30: #{tpu_custom_call.1} parent=5 // pred_check_branch
        %204 = sbr.rel (%p202) target = $region32
      $region31: #{tpu_custom_call.1} parent=5 // pred_region
        // Predicated region
        $region33: #{tpu_custom_call.1} parent=31 // pred_check
          %p205 = pneg %p38
        $region34: #{tpu_custom_call.1} parent=31 // pred_check_branch
          %207 = sbr.rel (%p205) target = $region36
        $region35: #{tpu_custom_call.1} parent=31 // pred_region
          %s208 = sand.u32 %s28, 1
          %s209 = scalar_lea.sflag [#allocation4], %s208
          %s210 = sand.u32 %s28, 1
          %s211 = smul.addr %s210, 16
          %s212 = scalar_lea.vmem [#allocation3], %s211
          %s214 = ssub.s32 256, 256
          %215 = vsyncadd %s209, %s214
          %s216 = smul.addr %s18, 2
          %s217 = smul.addr %s216, 128
          %s218 = scalar_lea.hbm %s0, %s217
          %s219 = sshll.u32 %s212, 4
          %s220 = int_to_ptr.vmem [resolvable:$true] %s219
          %225 = dma.hbm_to_vmem [thread:$0]  %s218, 256, %s220, %s209, 128, 128, 8
        $region36: #{tpu_custom_call.1} parent=31 // pred_fallthru
          _
      $region32: #{tpu_custom_call.1} parent=5 // pred_fallthru
        _
      %p226 = scmp.le.s32.totalorder 1, %s18
      %p227 = scmp.lt.s32.totalorder %s18, 3
      %p228 = pnand %p226, %p227
      %p229 = pneg %p228
      // Predicated region
      $region37: #{tpu_custom_call.1} parent=5 // pred_check
        _
      $region38: #{tpu_custom_call.1} parent=5 // pred_check_branch
        %231 = sbr.rel (%p228) target = $region40
      $region39: #{tpu_custom_call.1} parent=5 // pred_region
        %s232 = ssub.s32 %s18, 1
        %s233 = sand.u32 %s31, 1
        %s234 = scalar_lea.sflag [#allocation4], %s233
        %s235 = sand.u32 %s31, 1
        %s236 = smul.addr %s235, 16
        %s237 = scalar_lea.vmem [#allocation3], %s236
        // Predicated region
        $region41: #{tpu_custom_call.1} parent=39 // pred_check
          %p238 = pneg %p44
        $region42: #{tpu_custom_call.1} parent=39 // pred_check_branch
          %240 = sbr.rel (%p238) target = $region44
        $region43: #{tpu_custom_call.1} parent=39 // pred_region
          %241 = dma.done %s234, 256
        $region44: #{tpu_custom_call.1} parent=39 // pred_fallthru
          _
        // Predicated region
        $region45: #{tpu_custom_call.1} parent=39 // pred_check
          %p242 = pneg %p65
        $region46: #{tpu_custom_call.1} parent=39 // pred_check_branch
          %244 = sbr.rel (%p242) target = $region48
        $region47: #{tpu_custom_call.1} parent=39 // pred_region
          %245 = dma.done [#allocation7], 3072
        $region48: #{tpu_custom_call.1} parent=39 // pred_fallthru
          _
        // Predicated region
        $region49: #{tpu_custom_call.1} parent=39 // pred_check
          %p246 = pneg %p107
        $region50: #{tpu_custom_call.1} parent=39 // pred_check_branch
          %248 = sbr.rel (%p246) target = $region52
        $region51: #{tpu_custom_call.1} parent=39 // pred_region
          %249 = dma.done [#allocation7], 3072
        $region52: #{tpu_custom_call.1} parent=39 // pred_fallthru
          _
        %s250 = sand.u32 %s31, 1
        %s251 = scalar_lea.sflag [#allocation4], %s250
        %s252 = sand.u32 %s31, 1
        %s253 = smul.addr %s252, 16
        %s254 = scalar_lea.vmem [#allocation3], %s253
        %p255 = pneg %p44
        %p256 = pneg %p41
        %p257 = pneg %p65
        %p258 = pneg %p62
        %p259 = pneg %p86
        %p260 = pneg %p83
        %p261 = pneg %p107
        %p262 = pneg %p104
        %p263 = pneg %p128
        %p264 = pneg %p125
        %p265 = pneg %p154
        %p266 = pneg %p151
        %s267 = sand.u32 %s141, 1
        %s268 = scalar_lea.sflag [#allocation5], %s267
        %s269 = sand.u32 %s141, 1
        %s270 = smul.addr %s269, 16
        %s271 = scalar_lea.vmem [#allocation9], %s270
        %v273 = vld [vmem:[%s237] sm:$0xff]
        %v274 = vld [vmem:[%s237 + $0x8] sm:$0xff]
        %275 = vst [vmem:[#allocation2] sm:$0x1] 0.0
        %276 = vst [vmem:[#allocation2 + $0x11] sm:$0x1] 0.0
        %277 = vst [vmem:[#allocation2 + $0x1] sm:$0xff] %v273
        %278 = vst [vmem:[#allocation2 + $0x9] sm:$0xff] %v274
        %v279 = vld [vmem:[#allocation2] sm:$0xff]
        %v280 = vld [vmem:[#allocation2 + $0x8] sm:$0xff]
        %v281 = vld [vmem:[#allocation2 + $0x2] sm:$0xff]
        %v282 = vld [vmem:[#allocation2 + $0xa] sm:$0xff]
        %v283 = vpack.c.bf16 %v280, %v279
        %v284 = vpack.c.bf16 %v274, %v273
        %v285 = vpack.c.bf16 %v282, %v281
        %v286 = vld [vmem:[#allocation6] sm:$0xf]
        %v287 = vld [vmem:[#allocation6 + $0x4] sm:$0xf]
        %v288 = vld [vmem:[#allocation6 + $0x8] sm:$0xf]
        %v289 = vld [vmem:[#allocation6 + $0xc] sm:$0xf]
        %v290 = vld [vmem:[#allocation6 + $0x10] sm:$0xf]
        %v291 = vld [vmem:[#allocation6 + $0x14] sm:$0xf]
        %v292 = vld [vmem:[#allocation6 + $0x18] sm:$0xf]
        %v293 = vld [vmem:[#allocation6 + $0x1c] sm:$0xf]
        %v294 = vld [vmem:[#allocation6 + $0x20] sm:$0xf]
        %v295 = vld [vmem:[#allocation6 + $0x24] sm:$0xf]
        %v296 = vld [vmem:[#allocation6 + $0x28] sm:$0xf]
        %v297 = vld [vmem:[#allocation6 + $0x2c] sm:$0xf]
        %v298 = vld [vmem:[#allocation6 + $0x30] sm:$0xf]
        %v299 = vld [vmem:[#allocation6 + $0x34] sm:$0xf]
        %v300 = vld [vmem:[#allocation6 + $0x38] sm:$0xf]
        %v301 = vld [vmem:[#allocation6 + $0x3c] sm:$0xf]
        %v302 = vld [vmem:[#allocation6 + $0x40] sm:$0xf]
        %v303 = vld [vmem:[#allocation6 + $0x44] sm:$0xf]
        %v304 = vld [vmem:[#allocation6 + $0x48] sm:$0xf]
        %v305 = vld [vmem:[#allocation6 + $0x4c] sm:$0xf]
        %v306 = vld [vmem:[#allocation6 + $0x50] sm:$0xf]
        %v307 = vld [vmem:[#allocation6 + $0x54] sm:$0xf]
        %v308 = vld [vmem:[#allocation6 + $0x58] sm:$0xf]
        %v309 = vld [vmem:[#allocation6 + $0x5c] sm:$0xf]
        %v310 = vld [vmem:[#allocation6 + $0x60] sm:$0xf]
        %v311 = vld [vmem:[#allocation6 + $0x64] sm:$0xf]
        %v312 = vld [vmem:[#allocation6 + $0x68] sm:$0xf]
        %v313 = vld [vmem:[#allocation6 + $0x6c] sm:$0xf]
        %v314 = vld [vmem:[#allocation6 + $0x70] sm:$0xf]
        %v315 = vld [vmem:[#allocation6 + $0x74] sm:$0xf]
        %v316 = vld [vmem:[#allocation6 + $0x78] sm:$0xf]
        %v317 = vld [vmem:[#allocation6 + $0x7c] sm:$0xf]
        %v318 = vld [vmem:[#allocation6 + $0x80] sm:$0xf]
        %v319 = vld [vmem:[#allocation6 + $0x84] sm:$0xf]
        %v320 = vld [vmem:[#allocation6 + $0x88] sm:$0xf]
        %v321 = vld [vmem:[#allocation6 + $0x8c] sm:$0xf]
        %v322 = vld [vmem:[#allocation6 + $0x90] sm:$0xf]
        %v323 = vld [vmem:[#allocation6 + $0x94] sm:$0xf]
        %v324 = vld [vmem:[#allocation6 + $0x98] sm:$0xf]
        %v325 = vld [vmem:[#allocation6 + $0x9c] sm:$0xf]
        %v326 = vld [vmem:[#allocation6 + $0xa0] sm:$0xf]
        %v327 = vld [vmem:[#allocation6 + $0xa4] sm:$0xf]
        %v328 = vld [vmem:[#allocation6 + $0xa8] sm:$0xf]
        %v329 = vld [vmem:[#allocation6 + $0xac] sm:$0xf]
        %v330 = vld [vmem:[#allocation6 + $0xb0] sm:$0xf]
        %v331 = vld [vmem:[#allocation6 + $0xb4] sm:$0xf]
        %v332 = vld [vmem:[#allocation6 + $0xb8] sm:$0xf]
        %v333 = vld [vmem:[#allocation6 + $0xbc] sm:$0xf]
        %v334 = vld [vmem:[%s2] sm:$0x1]
        %v336 = vlaneseq
        %v337 = vshrl.u32 %v336, 7
        %v338 = vsub.s32 0, %v337
        %v339 = vrot.slane %v334, %v338
        %v389 = vunpack.c.l.b16 %v286
        %v390 = vunpack.c.l.b16 %v287
        %v391 = vunpack.c.l.b16 %v288
        %v392 = vunpack.c.l.b16 %v289
        %v393 = vunpack.c.l.b16 %v290
        %v394 = vunpack.c.l.b16 %v291
        %v395 = vunpack.c.l.b16 %v292
        %v396 = vunpack.c.l.b16 %v293
        %v397 = vunpack.c.l.b16 %v294
        %v398 = vunpack.c.l.b16 %v295
        %v399 = vunpack.c.l.b16 %v296
        %v400 = vunpack.c.l.b16 %v297
        %v401 = vunpack.c.l.b16 %v298
        %v402 = vunpack.c.l.b16 %v299
        %v403 = vunpack.c.l.b16 %v300
        %v404 = vunpack.c.l.b16 %v301
        %v405 = vunpack.c.l.b16 %v302
        %v406 = vunpack.c.l.b16 %v303
        %v407 = vunpack.c.l.b16 %v304
        %v408 = vunpack.c.l.b16 %v305
        %v409 = vunpack.c.l.b16 %v306
        %v410 = vunpack.c.l.b16 %v307
        %v411 = vunpack.c.l.b16 %v308
        %v412 = vunpack.c.l.b16 %v309
        %v413 = vunpack.c.l.b16 %v310
        %v414 = vunpack.c.l.b16 %v311
        %v415 = vunpack.c.l.b16 %v312
        %v416 = vunpack.c.l.b16 %v313
        %v417 = vunpack.c.l.b16 %v314
        %v418 = vunpack.c.l.b16 %v315
        %v419 = vunpack.c.l.b16 %v316
        %v420 = vunpack.c.l.b16 %v317
        %v421 = vunpack.c.l.b16 %v318
        %v422 = vunpack.c.l.b16 %v319
        %v423 = vunpack.c.l.b16 %v320
        %v424 = vunpack.c.l.b16 %v321
        %v425 = vunpack.c.l.b16 %v322
        %v426 = vunpack.c.l.b16 %v323
        %v427 = vunpack.c.l.b16 %v324
        %v428 = vunpack.c.l.b16 %v325
        %v429 = vunpack.c.l.b16 %v326
        %v430 = vunpack.c.l.b16 %v327
        %v431 = vunpack.c.l.b16 %v328
        %v432 = vunpack.c.l.b16 %v329
        %v433 = vunpack.c.l.b16 %v330
        %v434 = vunpack.c.l.b16 %v331
        %v435 = vunpack.c.l.b16 %v332
        %v436 = vunpack.c.l.b16 %v333
        %v437 = vpack.c.b16 %v390, %v389
        %v438 = vpack.c.b16 %v392, %v391
        %v439 = vpack.c.b16 %v394, %v393
        %v440 = vpack.c.b16 %v396, %v395
        %v441 = vpack.c.b16 %v398, %v397
        %v442 = vpack.c.b16 %v400, %v399
        %v443 = vpack.c.b16 %v402, %v401
        %v444 = vpack.c.b16 %v404, %v403
        %v445 = vpack.c.b16 %v406, %v405
        %v446 = vpack.c.b16 %v408, %v407
        %v447 = vpack.c.b16 %v410, %v409
        %v448 = vpack.c.b16 %v412, %v411
        %v449 = vpack.c.b16 %v414, %v413
        %v450 = vpack.c.b16 %v416, %v415
        %v451 = vpack.c.b16 %v418, %v417
        %v452 = vpack.c.b16 %v420, %v419
        %v453 = vpack.c.b16 %v422, %v421
        %v454 = vpack.c.b16 %v424, %v423
        %v455 = vpack.c.b16 %v426, %v425
        %v456 = vpack.c.b16 %v428, %v427
        %v457 = vpack.c.b16 %v430, %v429
        %v458 = vpack.c.b16 %v432, %v431
        %v459 = vpack.c.b16 %v434, %v433
        %v460 = vpack.c.b16 %v436, %v435
        %485 = vmatprep.subr.bf16.mxu0 0
        %486 = vmatpush1.bf16.msra.mxu0 %v437
        %487 = vmatprep.subr.bf16.mxu0 0
        %488 = vmatpush1.bf16.msra.mxu0 %v438
        %489 = vmatprep.subr.bf16.mxu0 0
        %490 = vmatpush1.bf16.msra.mxu0 %v439
        %491 = vmatprep.subr.bf16.mxu0 0
        %492 = vmatpush1.bf16.msra.mxu0 %v440
        %493 = vmatprep.subr.bf16.mxu0 0
        %494 = vmatpush1.bf16.msra.mxu0 %v441
        %495 = vmatprep.subr.bf16.mxu0 0
        %496 = vmatpush1.bf16.msra.mxu0 %v442
        %497 = vmatprep.subr.bf16.mxu0 0
        %498 = vmatpush1.bf16.msra.mxu0 %v443
        %499 = vmatprep.subr.bf16.mxu0 0
        %500 = vmatpush1.bf16.msra.mxu0 %v444
        %501 = vmatprep.subr.bf16.mxu0 0
        %502 = vmatpush1.bf16.msra.mxu0 %v445
        %503 = vmatprep.subr.bf16.mxu0 0
        %504 = vmatpush1.bf16.msra.mxu0 %v446
        %505 = vmatprep.subr.bf16.mxu0 0
        %506 = vmatpush1.bf16.msra.mxu0 %v447
        %507 = vmatprep.subr.bf16.mxu0 0
        %508 = vmatpush1.bf16.msra.mxu0 %v448
        %509 = vmatprep.subr.bf16.mxu0 0
        %510 = vmatpush1.bf16.msra.mxu0 %v449
        %511 = vmatprep.subr.bf16.mxu0 0
        %512 = vmatpush1.bf16.msra.mxu0 %v450
        %513 = vmatprep.subr.bf16.mxu0 0
        %514 = vmatpush1.bf16.msra.mxu0 %v451
        %515 = vmatprep.subr.bf16.mxu0 0
        %516 = vmatpush1.bf16.msra.mxu0 %v452
        %517 = vmatprep.mubr.bf16.mxu0 %v284
        %518 = vmatmul.mubr.bf16.gmra.mrb[0].mxu0 %v283
        %v519 = vpop.f32.mrb[0].mxu0
        %v520 = vadd.f32 %v339, %v519
        %v521 = vpop.f32.mrb[0].mxu0
        %v522 = vpop.f32.mrb[0].mxu0
        %v523 = vadd.f32 %v339, %v522
        %v524 = vpop.f32.mrb[0].mxu0
        %525 = vdwg.mxu0
        %526 = vmatprep.subr.bf16.mxu0 0
        %527 = vmatpush1.bf16.msra.mxu0 %v453
        %528 = vmatprep.subr.bf16.mxu0 0
        %529 = vmatpush1.bf16.msra.mxu0 %v454
        %530 = vmatprep.subr.bf16.mxu0 0
        %531 = vmatpush1.bf16.msra.mxu0 %v455
        %532 = vmatprep.subr.bf16.mxu0 0
        %533 = vmatpush1.bf16.msra.mxu0 %v456
        %534 = vmatprep.subr.bf16.mxu0 0
        %535 = vmatpush1.bf16.msra.mxu0 %v457
        %536 = vmatprep.subr.bf16.mxu0 0
        %537 = vmatpush1.bf16.msra.mxu0 %v458
        %538 = vmatprep.subr.bf16.mxu0 0
        %539 = vmatpush1.bf16.msra.mxu0 %v459
        %540 = vmatprep.subr.bf16.mxu0 0
        %541 = vmatpush1.bf16.msra.mxu0 %v460
        %542 = vmatprep.subr.bf16.mxu0 0
        %543 = vmatpush1.bf16.msra.mxu0 0
        %544 = vmatprep.subr.bf16.mxu0 0
        %545 = vmatpush1.bf16.msra.mxu0 0
        %546 = vmatprep.subr.bf16.mxu0 0
        %547 = vmatpush1.bf16.msra.mxu0 0
        %548 = vmatprep.subr.bf16.mxu0 0
        %549 = vmatpush1.bf16.msra.mxu0 0
        %550 = vmatprep.subr.bf16.mxu0 0
        %551 = vmatpush1.bf16.msra.mxu0 0
        %552 = vmatprep.subr.bf16.mxu0 0
        %553 = vmatpush1.bf16.msra.mxu0 0
        %554 = vmatprep.subr.bf16.mxu0 0
        %555 = vmatpush1.bf16.msra.mxu0 0
        %556 = vmatprep.subr.bf16.mxu0 0
        %557 = vmatpush1.bf16.msra.mxu0 0
        %558 = vmatprep.mubr.bf16.mxu0 0
        %559 = vmatmul.mubr.bf16.gmra.mrb[0].mxu0 %v285
        %v560 = vpop.f32.mrb[0].mxu0
        %v561 = vadd.f32 %v520, %v560
        %v562 = vpop.f32.mrb[0].mxu0
        %v563 = vpop.f32.mrb[0].mxu0
        %v564 = vadd.f32 %v523, %v563
        %v565 = vpop.f32.mrb[0].mxu0
        %566 = vdwg.mxu0
        %v567 = vmax.f32 %v561, 0.0
        %v568 = vmax.f32 %v564, 0.0
        %569 = vst [vmem:[#allocation2 + $0x1] sm:$0xff] %v567
        %570 = vst [vmem:[#allocation2 + $0x9] sm:$0xff] %v568
        %v571 = vld [vmem:[#allocation2] sm:$0xff]
        %v572 = vld [vmem:[#allocation2 + $0x8] sm:$0xff]
        %v573 = vld [vmem:[#allocation2 + $0x2] sm:$0xff]
        %v574 = vld [vmem:[#allocation2 + $0xa] sm:$0xff]
        %v575 = vpack.c.bf16 %v572, %v571
        %v576 = vpack.c.bf16 %v568, %v567
        %v577 = vpack.c.bf16 %v574, %v573
        %v578 = vld [vmem:[#allocation8] sm:$0xf]
        %v579 = vld [vmem:[#allocation8 + $0x4] sm:$0xf]
        %v580 = vld [vmem:[#allocation8 + $0x8] sm:$0xf]
        %v581 = vld [vmem:[#allocation8 + $0xc] sm:$0xf]
        %v582 = vld [vmem:[#allocation8 + $0x10] sm:$0xf]
        %v583 = vld [vmem:[#allocation8 + $0x14] sm:$0xf]
        %v584 = vld [vmem:[#allocation8 + $0x18] sm:$0xf]
        %v585 = vld [vmem:[#allocation8 + $0x1c] sm:$0xf]
        %v586 = vld [vmem:[#allocation8 + $0x20] sm:$0xf]
        %v587 = vld [vmem:[#allocation8 + $0x24] sm:$0xf]
        %v588 = vld [vmem:[#allocation8 + $0x28] sm:$0xf]
        %v589 = vld [vmem:[#allocation8 + $0x2c] sm:$0xf]
        %v590 = vld [vmem:[#allocation8 + $0x30] sm:$0xf]
        %v591 = vld [vmem:[#allocation8 + $0x34] sm:$0xf]
        %v592 = vld [vmem:[#allocation8 + $0x38] sm:$0xf]
        %v593 = vld [vmem:[#allocation8 + $0x3c] sm:$0xf]
        %v594 = vld [vmem:[#allocation8 + $0x40] sm:$0xf]
        %v595 = vld [vmem:[#allocation8 + $0x44] sm:$0xf]
        %v596 = vld [vmem:[#allocation8 + $0x48] sm:$0xf]
        %v597 = vld [vmem:[#allocation8 + $0x4c] sm:$0xf]
        %v598 = vld [vmem:[#allocation8 + $0x50] sm:$0xf]
        %v599 = vld [vmem:[#allocation8 + $0x54] sm:$0xf]
        %v600 = vld [vmem:[#allocation8 + $0x58] sm:$0xf]
        %v601 = vld [vmem:[#allocation8 + $0x5c] sm:$0xf]
        %v602 = vld [vmem:[#allocation8 + $0x60] sm:$0xf]
        %v603 = vld [vmem:[#allocation8 + $0x64] sm:$0xf]
        %v604 = vld [vmem:[#allocation8 + $0x68] sm:$0xf]
        %v605 = vld [vmem:[#allocation8 + $0x6c] sm:$0xf]
        %v606 = vld [vmem:[#allocation8 + $0x70] sm:$0xf]
        %v607 = vld [vmem:[#allocation8 + $0x74] sm:$0xf]
        %v608 = vld [vmem:[#allocation8 + $0x78] sm:$0xf]
        %v609 = vld [vmem:[#allocation8 + $0x7c] sm:$0xf]
        %v610 = vld [vmem:[#allocation8 + $0x80] sm:$0xf]
        %v611 = vld [vmem:[#allocation8 + $0x84] sm:$0xf]
        %v612 = vld [vmem:[#allocation8 + $0x88] sm:$0xf]
        %v613 = vld [vmem:[#allocation8 + $0x8c] sm:$0xf]
        %v614 = vld [vmem:[#allocation8 + $0x90] sm:$0xf]
        %v615 = vld [vmem:[#allocation8 + $0x94] sm:$0xf]
        %v616 = vld [vmem:[#allocation8 + $0x98] sm:$0xf]
        %v617 = vld [vmem:[#allocation8 + $0x9c] sm:$0xf]
        %v618 = vld [vmem:[#allocation8 + $0xa0] sm:$0xf]
        %v619 = vld [vmem:[#allocation8 + $0xa4] sm:$0xf]
        %v620 = vld [vmem:[#allocation8 + $0xa8] sm:$0xf]
        %v621 = vld [vmem:[#allocation8 + $0xac] sm:$0xf]
        %v622 = vld [vmem:[#allocation8 + $0xb0] sm:$0xf]
        %v623 = vld [vmem:[#allocation8 + $0xb4] sm:$0xf]
        %v624 = vld [vmem:[#allocation8 + $0xb8] sm:$0xf]
        %v625 = vld [vmem:[#allocation8 + $0xbc] sm:$0xf]
        %v626 = vld [vmem:[%s4] sm:$0x1]
        %v628 = vlaneseq
        %v629 = vshrl.u32 %v628, 7
        %v630 = vsub.s32 0, %v629
        %v631 = vrot.slane %v626, %v630
        %v681 = vunpack.c.l.b16 %v578
        %v682 = vunpack.c.l.b16 %v579
        %v683 = vunpack.c.l.b16 %v580
        %v684 = vunpack.c.l.b16 %v581
        %v685 = vunpack.c.l.b16 %v582
        %v686 = vunpack.c.l.b16 %v583
        %v687 = vunpack.c.l.b16 %v584
        %v688 = vunpack.c.l.b16 %v585
        %v689 = vunpack.c.l.b16 %v586
        %v690 = vunpack.c.l.b16 %v587
        %v691 = vunpack.c.l.b16 %v588
        %v692 = vunpack.c.l.b16 %v589
        %v693 = vunpack.c.l.b16 %v590
        %v694 = vunpack.c.l.b16 %v591
        %v695 = vunpack.c.l.b16 %v592
        %v696 = vunpack.c.l.b16 %v593
        %v697 = vunpack.c.l.b16 %v594
        %v698 = vunpack.c.l.b16 %v595
        %v699 = vunpack.c.l.b16 %v596
        %v700 = vunpack.c.l.b16 %v597
        %v701 = vunpack.c.l.b16 %v598
        %v702 = vunpack.c.l.b16 %v599
        %v703 = vunpack.c.l.b16 %v600
        %v704 = vunpack.c.l.b16 %v601
        %v705 = vunpack.c.l.b16 %v602
        %v706 = vunpack.c.l.b16 %v603
        %v707 = vunpack.c.l.b16 %v604
        %v708 = vunpack.c.l.b16 %v605
        %v709 = vunpack.c.l.b16 %v606
        %v710 = vunpack.c.l.b16 %v607
        %v711 = vunpack.c.l.b16 %v608
        %v712 = vunpack.c.l.b16 %v609
        %v713 = vunpack.c.l.b16 %v610
        %v714 = vunpack.c.l.b16 %v611
        %v715 = vunpack.c.l.b16 %v612
        %v716 = vunpack.c.l.b16 %v613
        %v717 = vunpack.c.l.b16 %v614
        %v718 = vunpack.c.l.b16 %v615
        %v719 = vunpack.c.l.b16 %v616
        %v720 = vunpack.c.l.b16 %v617
        %v721 = vunpack.c.l.b16 %v618
        %v722 = vunpack.c.l.b16 %v619
        %v723 = vunpack.c.l.b16 %v620
        %v724 = vunpack.c.l.b16 %v621
        %v725 = vunpack.c.l.b16 %v622
        %v726 = vunpack.c.l.b16 %v623
        %v727 = vunpack.c.l.b16 %v624
        %v728 = vunpack.c.l.b16 %v625
        %v729 = vpack.c.b16 %v682, %v681
        %v730 = vpack.c.b16 %v684, %v683
        %v731 = vpack.c.b16 %v686, %v685
        %v732 = vpack.c.b16 %v688, %v687
        %v733 = vpack.c.b16 %v690, %v689
        %v734 = vpack.c.b16 %v692, %v691
        %v735 = vpack.c.b16 %v694, %v693
        %v736 = vpack.c.b16 %v696, %v695
        %v737 = vpack.c.b16 %v698, %v697
        %v738 = vpack.c.b16 %v700, %v699
        %v739 = vpack.c.b16 %v702, %v701
        %v740 = vpack.c.b16 %v704, %v703
        %v741 = vpack.c.b16 %v706, %v705
        %v742 = vpack.c.b16 %v708, %v707
        %v743 = vpack.c.b16 %v710, %v709
        %v744 = vpack.c.b16 %v712, %v711
        %v745 = vpack.c.b16 %v714, %v713
        %v746 = vpack.c.b16 %v716, %v715
        %v747 = vpack.c.b16 %v718, %v717
        %v748 = vpack.c.b16 %v720, %v719
        %v749 = vpack.c.b16 %v722, %v721
        %v750 = vpack.c.b16 %v724, %v723
        %v751 = vpack.c.b16 %v726, %v725
        %v752 = vpack.c.b16 %v728, %v727
        %777 = vmatprep.subr.bf16.mxu0 0
        %778 = vmatpush1.bf16.msra.mxu0 %v729
        %779 = vmatprep.subr.bf16.mxu0 0
        %780 = vmatpush1.bf16.msra.mxu0 %v730
        %781 = vmatprep.subr.bf16.mxu0 0
        %782 = vmatpush1.bf16.msra.mxu0 %v731
        %783 = vmatprep.subr.bf16.mxu0 0
        %784 = vmatpush1.bf16.msra.mxu0 %v732
        %785 = vmatprep.subr.bf16.mxu0 0
        %786 = vmatpush1.bf16.msra.mxu0 %v733
        %787 = vmatprep.subr.bf16.mxu0 0
        %788 = vmatpush1.bf16.msra.mxu0 %v734
        %789 = vmatprep.subr.bf16.mxu0 0
        %790 = vmatpush1.bf16.msra.mxu0 %v735
        %791 = vmatprep.subr.bf16.mxu0 0
        %792 = vmatpush1.bf16.msra.mxu0 %v736
        %793 = vmatprep.subr.bf16.mxu0 0
        %794 = vmatpush1.bf16.msra.mxu0 %v737
        %795 = vmatprep.subr.bf16.mxu0 0
        %796 = vmatpush1.bf16.msra.mxu0 %v738
        %797 = vmatprep.subr.bf16.mxu0 0
        %798 = vmatpush1.bf16.msra.mxu0 %v739
        %799 = vmatprep.subr.bf16.mxu0 0
        %800 = vmatpush1.bf16.msra.mxu0 %v740
        %801 = vmatprep.subr.bf16.mxu0 0
        %802 = vmatpush1.bf16.msra.mxu0 %v741
        %803 = vmatprep.subr.bf16.mxu0 0
        %804 = vmatpush1.bf16.msra.mxu0 %v742
        %805 = vmatprep.subr.bf16.mxu0 0
        %806 = vmatpush1.bf16.msra.mxu0 %v743
        %807 = vmatprep.subr.bf16.mxu0 0
        %808 = vmatpush1.bf16.msra.mxu0 %v744
        %809 = vmatprep.mubr.bf16.mxu0 %v576
        %810 = vmatmul.mubr.bf16.gmra.mrb[0].mxu0 %v575
        %v811 = vpop.f32.mrb[0].mxu0
        %v812 = vadd.f32 %v631, %v811
        %v813 = vpop.f32.mrb[0].mxu0
        %v814 = vpop.f32.mrb[0].mxu0
        %v815 = vadd.f32 %v631, %v814
        %v816 = vpop.f32.mrb[0].mxu0
        %817 = vdwg.mxu0
        %818 = vmatprep.subr.bf16.mxu0 0
        %819 = vmatpush1.bf16.msra.mxu0 %v745
        %820 = vmatprep.subr.bf16.mxu0 0
        %821 = vmatpush1.bf16.msra.mxu0 %v746
        %822 = vmatprep.subr.bf16.mxu0 0
        %823 = vmatpush1.bf16.msra.mxu0 %v747
        %824 = vmatprep.subr.bf16.mxu0 0
        %825 = vmatpush1.bf16.msra.mxu0 %v748
        %826 = vmatprep.subr.bf16.mxu0 0
        %827 = vmatpush1.bf16.msra.mxu0 %v749
        %828 = vmatprep.subr.bf16.mxu0 0
        %829 = vmatpush1.bf16.msra.mxu0 %v750
        %830 = vmatprep.subr.bf16.mxu0 0
        %831 = vmatpush1.bf16.msra.mxu0 %v751
        %832 = vmatprep.subr.bf16.mxu0 0
        %833 = vmatpush1.bf16.msra.mxu0 %v752
        %834 = vmatprep.subr.bf16.mxu0 0
        %835 = vmatpush1.bf16.msra.mxu0 0
        %836 = vmatprep.subr.bf16.mxu0 0
        %837 = vmatpush1.bf16.msra.mxu0 0
        %838 = vmatprep.subr.bf16.mxu0 0
        %839 = vmatpush1.bf16.msra.mxu0 0
        %840 = vmatprep.subr.bf16.mxu0 0
        %841 = vmatpush1.bf16.msra.mxu0 0
        %842 = vmatprep.subr.bf16.mxu0 0
        %843 = vmatpush1.bf16.msra.mxu0 0
        %844 = vmatprep.subr.bf16.mxu0 0
        %845 = vmatpush1.bf16.msra.mxu0 0
        %846 = vmatprep.subr.bf16.mxu0 0
        %847 = vmatpush1.bf16.msra.mxu0 0
        %848 = vmatprep.subr.bf16.mxu0 0
        %849 = vmatpush1.bf16.msra.mxu0 0
        %850 = vmatprep.mubr.bf16.mxu0 0
        %851 = vmatmul.mubr.bf16.gmra.mrb[0].mxu0 %v577
        %v852 = vpop.f32.mrb[0].mxu0
        %v853 = vadd.f32 %v812, %v852
        %v854 = vpop.f32.mrb[0].mxu0
        %v855 = vpop.f32.mrb[0].mxu0
        %v856 = vadd.f32 %v815, %v855
        %v857 = vpop.f32.mrb[0].mxu0
        %858 = vdwg.mxu0
        %v859 = vmul.f32 %v853, 0.1
        %v860 = vmul.f32 %v856, 0.1
        %v861 = vadd.f32 %v273, %v859
        %v862 = vadd.f32 %v274, %v860
        %863 = vst [vmem:[%s271] sm:$0xff] %v861
        %864 = vst [vmem:[%s271 + $0x8] sm:$0xff] %v862
        %s865 = sand.u32 %s141, 1
        %s866 = scalar_lea.sflag [#allocation5], %s865
        %s867 = sand.u32 %s141, 1
        %s868 = smul.addr %s867, 16
        %s869 = scalar_lea.vmem [#allocation9], %s868
        // Predicated region
        $region53: #{tpu_custom_call.1} parent=39 // pred_check
          %p870 = pneg %p151
        $region54: #{tpu_custom_call.1} parent=39 // pred_check_branch
          %872 = sbr.rel (%p870) target = $region56
        $region55: #{tpu_custom_call.1} parent=39 // pred_region
          %s874 = ssub.s32 256, 256
          %875 = vsyncadd %s866, %s874
          %s876 = smul.addr %s23, 2
          %s877 = smul.addr %s876, 128
          %s878 = scalar_lea.hbm %s5, %s877
          %s879 = sshll.u32 %s869, 4
          %s880 = int_to_ptr.vmem [resolvable:$true] %s879
          %885 = dma.vmem_to_hbm [thread:$0]  %s880, 256, %s878, %s866, 128, 128, 8
        $region56: #{tpu_custom_call.1} parent=39 // pred_fallthru
          _
      $region40: #{tpu_custom_call.1} parent=5 // pred_fallthru
        _
      %p886 = scmp.le.s32.totalorder 2, %s18
      // Predicated region
      $region57: #{tpu_custom_call.1} parent=5 // pred_check
        %p887 = pneg %p886
      $region58: #{tpu_custom_call.1} parent=5 // pred_check_branch
        %889 = sbr.rel (%p887) target = $region60
      $region59: #{tpu_custom_call.1} parent=5 // pred_region
        %s890 = ssub.s32 %s18, 2
        // Predicated region
        $region61: #{tpu_custom_call.1} parent=59 // pred_check
          %p891 = pneg %p157
        $region62: #{tpu_custom_call.1} parent=59 // pred_check_branch
          %893 = sbr.rel (%p891) target = $region64
        $region63: #{tpu_custom_call.1} parent=59 // pred_region
          %s894 = sand.u32 %s142, 1
          %s895 = scalar_lea.sflag [#allocation5], %s894
          %s896 = sand.u32 %s142, 1
          %s897 = smul.addr %s896, 16
          %s898 = scalar_lea.vmem [#allocation9], %s897
          %899 = dma.done %s895, 256
        $region64: #{tpu_custom_call.1} parent=59 // pred_fallthru
          _
      $region60: #{tpu_custom_call.1} parent=5 // pred_fallthru
        _
    $region6: #{tpu_custom_call.1} parent=1 // loop_footer
      %s22 = sadd.s32 1, %s18
    $region7: #{tpu_custom_call.1} parent=1 // loop_footer_branch
      %17 = sbr.rel target = $region3
    $region8: #{tpu_custom_call.1} parent=1 // loop_exit
      _
    %900 = vsyncpa [#allocation4], 1
    %s901 = scalar_lea.sflag [#allocation4], 1
    %902 = vsyncpa %s901, 1
    %903 = vsyncpa [#allocation7], 1
    %904 = vsyncpa [#allocation5], 1
    %s905 = scalar_lea.sflag [#allocation5], 1
    %906 = vsyncpa %s905, 1

</llo_original>
